<compile_context>
chip_gen: v6e
topology: v6e:2x2x1
jax: 0.10.0
libtpu: 0.0.40
codegen_flags: <defaults>
</compile_context>

<pallas_src>
import functools

import jax
import jax.numpy as jnp
from jax.experimental import pallas as pl
from jax.experimental.pallas import tpu as pltpu

BF16 = jnp.bfloat16
F32 = jnp.float32
BN_EPS = 1e-5
ROW_TILE = 1024


def _vmem_limit_bytes():
    try:
        cap = int(pltpu.get_tpu_info().vmem_capacity_bytes)
        return min(cap * 3 // 4, 100 * 1024 * 1024)
    except Exception:
        return 32 * 1024 * 1024


_VMEM_LIMIT = _vmem_limit_bytes()


def _cparams(*sem):
    return pltpu.CompilerParams(dimension_semantics=sem,
                                vmem_limit_bytes=_VMEM_LIMIT)


def _make_divisible(v, divisor, min_value=None):
    if min_value is None:
        min_value = divisor
    new_v = max(min_value, int(v + divisor / 2) // divisor * divisor)
    if new_v < 0.9 * v:
        new_v += divisor
    return new_v


# ----------------------------- in-kernel helpers ------------------------------


def _sigmoid(x):
    # Exact sigmoid (review: avoid approx-reciprocal error compounding in SiLU).
    return 1.0 / (1.0 + jnp.exp(-x))


def _bn_coeffs(st, g, b, total, eps):
    """st: (N, 2, C) per-image (sum, sumsq); returns per-channel scale/shift."""
    ssum = jnp.sum(st[:, 0:1, :], axis=0)                # (1, C)
    ssq = jnp.sum(st[:, 1:2, :], axis=0)                 # (1, C)
    mean = ssum * (1.0 / total)
    var = jnp.maximum(ssq * (1.0 / total) - mean * mean, 0.0)
    inv = jax.lax.rsqrt(var + eps)
    sc = g * inv
    sh = b - mean * sc
    return sc, sh


def _stats_full(acc):
    s1 = jnp.sum(acc, axis=0, keepdims=True)
    s2 = jnp.sum(acc * acc, axis=0, keepdims=True)
    return jnp.concatenate([s1, s2], axis=0)             # (2, C)


def _stats_masked(acc, valid_rows):
    rmask = jax.lax.broadcasted_iota(jnp.int32, (acc.shape[0], 1), 0) < valid_rows
    s1 = jnp.sum(jnp.where(rmask, acc, 0.0), axis=0, keepdims=True)
    s2 = jnp.sum(jnp.where(rmask, acc * acc, 0.0), axis=0, keepdims=True)
    return jnp.concatenate([s1, s2], axis=0)


def _pad_hw(v, H, W):
    """(H, W, C) -> zero padded (H+2, W+2, C) (same as conv2d padding=1)."""
    C = v.shape[-1]
    zr = jnp.zeros((1, W, C), v.dtype)
    v = jnp.concatenate([zr, v, zr], axis=0)
    zc = jnp.zeros((H + 2, 1, C), v.dtype)
    return jnp.concatenate([zc, v, zc], axis=1)


# ----------------------------- 1x1 expansion conv -----------------------------
# Optionally folds the previous block's projection BN (+ residual) into its
# prologue and emits the normalized input (this block's residual source)
# alongside the raw expansion output + its BN stats.


def _expand1x1_kernel(*refs, hw, tr, fold, has_res, total_in, eps):
    i = 0
    x_ref = refs[i]; i += 1
    if fold:
        stp_ref, gp_ref, bp_ref = refs[i], refs[i + 1], refs[i + 2]; i += 3
    if has_res:
        res_ref = refs[i]; i += 1
    w_ref = refs[i]; i += 1
    if fold:
        xin_ref = refs[i]; i += 1
    t_ref, stats_ref = refs[i], refs[i + 1]

    r = pl.program_id(1)
    x = x_ref[...]                                        # (tr, Cin) bf16
    if fold or has_res:
        xf = x.astype(F32)
        if fold:
            sc, sh = _bn_coeffs(stp_ref[...], gp_ref[...], bp_ref[...],
                                total_in, eps)
            xf = xf * sc + sh
        if has_res:
            xf = xf + res_ref[...].astype(F32)
        x = xf.astype(BF16)
        if fold:
            xin_ref[...] = x

    acc = jnp.dot(x, w_ref[...], preferred_element_type=F32)   # (tr, Cout) f32
    t_ref[...] = acc.astype(t_ref.dtype)

    @pl.when(r == 0)
    def _init():
        stats_ref[...] = jnp.zeros_like(stats_ref)

    stats_ref[...] = stats_ref[...] + _stats_masked(acc, hw - r * tr)


def expand1x1(x, w, bn_prev=None, residual=None):
    N, HW, Cin = x.shape
    Cout = w.shape[1]
    tr = HW if HW <= ROW_TILE else ROW_TILE
    nr = pl.cdiv(HW, tr)
    fold = bn_prev is not None
    has_res = residual is not None

    in_specs = [pl.BlockSpec((None, tr, Cin), lambda n, r: (n, r, 0))]
    args = [x]
    total_in = 1.0
    if fold:
        stp, gp, bp, total_in = bn_prev
        in_specs += [pl.BlockSpec((N, 2, Cin), lambda n, r: (0, 0, 0)),
                     pl.BlockSpec((1, Cin), lambda n, r: (0, 0)),
                     pl.BlockSpec((1, Cin), lambda n, r: (0, 0))]
        args += [stp, gp.reshape(1, Cin).astype(F32),
                 bp.reshape(1, Cin).astype(F32)]
    if has_res:
        in_specs.append(pl.BlockSpec((None, tr, Cin), lambda n, r: (n, r, 0)))
        args.append(residual)
    in_specs.append(pl.BlockSpec((Cin, Cout), lambda n, r: (0, 0)))
    args.append(w.astype(BF16))

    out_shapes, out_specs = [], []
    if fold:
        out_shapes.append(jax.ShapeDtypeStruct((N, HW, Cin), BF16))
        out_specs.append(pl.BlockSpec((None, tr, Cin), lambda n, r: (n, r, 0)))
    out_shapes += [jax.ShapeDtypeStruct((N, HW, Cout), BF16),
                   jax.ShapeDtypeStruct((N, 2, Cout), F32)]
    out_specs += [pl.BlockSpec((None, tr, Cout), lambda n, r: (n, r, 0)),
                  pl.BlockSpec((None, 2, Cout), lambda n, r: (n, 0, 0))]

    outs = pl.pallas_call(
        functools.partial(_expand1x1_kernel, hw=HW, tr=tr, fold=fold,
                          has_res=has_res, total_in=total_in, eps=BN_EPS),
        out_shape=tuple(out_shapes),
        grid=(N, nr),
        in_specs=in_specs,
        out_specs=tuple(out_specs),
        compiler_params=_cparams("parallel", "arbitrary"),
    )(*args)
    if fold:
        return outs[0], outs[1], outs[2]
    return None, outs[0], outs[1]


# ----------------------------- full 3x3 conv (fused-MBConv expansion) ---------


def _conv3x3_kernel(*refs, H, W, fold, has_res, total_in, eps):
    i = 0
    x_ref = refs[i]; i += 1
    if fold:
        stp_ref, gp_ref, bp_ref = refs[i], refs[i + 1], refs[i + 2]; i += 3
    if has_res:
        res_ref = refs[i]; i += 1
    w_ref = refs[i]; i += 1                               # (9*Cin, Cout) bf16
    if fold:
        xin_ref = refs[i]; i += 1
    t_ref, stats_ref = refs[i], refs[i + 1]

    Cin = x_ref.shape[-1]
    x = x_ref[...]                                        # (HW, Cin) bf16
    if fold or has_res:
        xf = x.astype(F32)
        if fold:
            sc, sh = _bn_coeffs(stp_ref[...], gp_ref[...], bp_ref[...],
                                total_in, eps)
            xf = xf * sc + sh
        if has_res:
            xf = xf + res_ref[...].astype(F32)
        x = xf.astype(BF16)
        if fold:
            xin_ref[...] = x

    # Zero halo; 9 static-slice taps; one lane-concat; ONE K=9*Cin MXU matmul.
    xp = _pad_hw(x.reshape(H, W, Cin), H, W)              # (H+2, W+2, Cin)
    taps = [xp[ky:ky + H, kx:kx + W, :]
            for ky in range(3) for kx in range(3)]
    cat = jnp.concatenate(taps, axis=-1).reshape(H * W, 9 * Cin)
    acc = jnp.dot(cat, w_ref[...], preferred_element_type=F32)   # (HW, Cout)
    t_ref[...] = acc.astype(t_ref.dtype)
    stats_ref[...] = _stats_full(acc)


def conv3x3(x, w9, H, W, bn_prev=None, residual=None):
    N, HW, Cin = x.shape
    Cout = w9.shape[-1]
    fold = bn_prev is not None
    has_res = residual is not None
    w = w9.reshape(9 * Cin, Cout).astype(BF16)

    in_specs = [pl.BlockSpec((None, HW, Cin), lambda n: (n, 0, 0))]
    args = [x]
    total_in = 1.0
    if fold:
        stp, gp, bp, total_in = bn_prev
        in_specs += [pl.BlockSpec((N, 2, Cin), lambda n: (0, 0, 0)),
                     pl.BlockSpec((1, Cin), lambda n: (0, 0)),
                     pl.BlockSpec((1, Cin), lambda n: (0, 0))]
        args += [stp, gp.reshape(1, Cin).astype(F32),
                 bp.reshape(1, Cin).astype(F32)]
    if has_res:
        in_specs.append(pl.BlockSpec((None, HW, Cin), lambda n: (n, 0, 0)))
        args.append(residual)
    in_specs.append(pl.BlockSpec((9 * Cin, Cout), lambda n: (0, 0)))
    args.append(w)

    out_shapes, out_specs = [], []
    if fold:
        out_shapes.append(jax.ShapeDtypeStruct((N, HW, Cin), BF16))
        out_specs.append(pl.BlockSpec((None, HW, Cin), lambda n: (n, 0, 0)))
    out_shapes += [jax.ShapeDtypeStruct((N, HW, Cout), BF16),
                   jax.ShapeDtypeStruct((N, 2, Cout), F32)]
    out_specs += [pl.BlockSpec((None, HW, Cout), lambda n: (n, 0, 0)),
                  pl.BlockSpec((None, 2, Cout), lambda n: (n, 0, 0))]

    outs = pl.pallas_call(
        functools.partial(_conv3x3_kernel, H=H, W=W, fold=fold, has_res=has_res,
                          total_in=total_in, eps=BN_EPS),
        out_shape=tuple(out_shapes),
        grid=(N,),
        in_specs=in_specs,
        out_specs=tuple(out_specs),
        compiler_params=_cparams("parallel"),
    )(*args)
    if fold:
        return outs[0], outs[1], outs[2]
    return None, outs[0], outs[1]


# ----------------------------- depthwise 3x3 conv -----------------------------
# Prologue folds the expansion conv's BN + SiLU; taps are static slices of a
# zero halo; bf16 multiplies, f32 accumulation.


def _dwconv_kernel(t_ref, st_ref, g_ref, b_ref, w_ref, u_ref, stats_ref,
                   *, H, W, total, eps):
    C = t_ref.shape[-1]
    sc, sh = _bn_coeffs(st_ref[...], g_ref[...], b_ref[...], total, eps)
    v = t_ref[...].astype(F32) * sc + sh
    v = v * _sigmoid(v)                                   # SiLU
    xp = _pad_hw(v.reshape(H, W, C).astype(BF16), H, W)   # (H+2, W+2, C) bf16
    w = w_ref[...]                                        # (9, 1, C) bf16
    acc = jnp.zeros((H * W, C), F32)
    k = 0
    for ky in range(3):
        for kx in range(3):
            tap = xp[ky:ky + H, kx:kx + W, :].reshape(H * W, C)
            acc = acc + (tap * w[k]).astype(F32)
            k += 1
    u_ref[...] = acc.astype(u_ref.dtype)
    stats_ref[...] = _stats_full(acc)


def dwconv3x3(t, st, g, b, w_dw, H, W, total):
    N, HW, C = t.shape
    return pl.pallas_call(
        functools.partial(_dwconv_kernel, H=H, W=W, total=total, eps=BN_EPS),
        out_shape=(jax.ShapeDtypeStruct((N, HW, C), BF16),
                   jax.ShapeDtypeStruct((N, 2, C), F32)),
        grid=(N,),
        in_specs=[pl.BlockSpec((None, HW, C), lambda n: (n, 0, 0)),
                  pl.BlockSpec((N, 2, C), lambda n: (0, 0, 0)),
                  pl.BlockSpec((1, C), lambda n: (0, 0)),
                  pl.BlockSpec((1, C), lambda n: (0, 0)),
                  pl.BlockSpec((9, 1, C), lambda n: (0, 0, 0))],
        out_specs=(pl.BlockSpec((None, HW, C), lambda n: (n, 0, 0)),
                   pl.BlockSpec((None, 2, C), lambda n: (n, 0, 0))),
        compiler_params=_cparams("parallel"),
    )(t, st, g.reshape(1, C).astype(F32), b.reshape(1, C).astype(F32),
      w_dw.astype(BF16))


# ----------------------------- SE + projection (fully fused) ------------------


def _se_proj_kernel(u_ref, st_ref, g_ref, b_ref, w1_ref, b1_ref, w2_ref,
                    b2_ref, wp_ref, p_ref, stats_ref, *, inv_hw, total, eps):
    sc, sh = _bn_coeffs(st_ref[...], g_ref[...], b_ref[...], total, eps)
    v = u_ref[...].astype(F32) * sc + sh
    v = v * _sigmoid(v)                                   # SiLU -> (HW, hidden)
    m = jnp.sum(v, axis=0, keepdims=True) * inv_hw        # SE squeeze (1, hidden)
    h = jnp.dot(m, w1_ref[...], preferred_element_type=F32) + b1_ref[...]
    h = h * _sigmoid(h)                                   # SiLU
    s = _sigmoid(jnp.dot(h, w2_ref[...], preferred_element_type=F32) + b2_ref[...])
    # Excite: one f32 mul on the already-resident f32 activation.
    # (At very large HW, scaling w_proj's rows instead would be cheaper.)
    vb = (v * s).astype(BF16)
    acc = jnp.dot(vb, wp_ref[...], preferred_element_type=F32)   # (HW, oup)
    p_ref[...] = acc.astype(p_ref.dtype)
    stats_ref[...] = _stats_full(acc)


def se_proj(u, st, g, b, p, total):
    N, HW, hidden = u.shape
    mid = p["se_w1"].shape[1]
    oup = p["w_proj"].shape[1]
    return pl.pallas_call(
        functools.partial(_se_proj_kernel, inv_hw=1.0 / float(HW), total=total,
                          eps=BN_EPS),
        out_shape=(jax.ShapeDtypeStruct((N, HW, oup), BF16),
                   jax.ShapeDtypeStruct((N, 2, oup), F32)),
        grid=(N,),
        in_specs=[pl.BlockSpec((None, HW, hidden), lambda n: (n, 0, 0)),
                  pl.BlockSpec((N, 2, hidden), lambda n: (0, 0, 0)),
                  pl.BlockSpec((1, hidden), lambda n: (0, 0)),
                  pl.BlockSpec((1, hidden), lambda n: (0, 0)),
                  pl.BlockSpec((hidden, mid), lambda n: (0, 0)),
                  pl.BlockSpec((1, mid), lambda n: (0, 0)),
                  pl.BlockSpec((mid, hidden), lambda n: (0, 0)),
                  pl.BlockSpec((1, hidden), lambda n: (0, 0)),
                  pl.BlockSpec((hidden, oup), lambda n: (0, 0))],
        out_specs=(pl.BlockSpec((None, HW, oup), lambda n: (n, 0, 0)),
                   pl.BlockSpec((None, 2, oup), lambda n: (n, 0, 0))),
        compiler_params=_cparams("parallel"),
    )(u, st, g.reshape(1, hidden).astype(F32), b.reshape(1, hidden).astype(F32),
      p["se_w1"].astype(F32), p["se_b1"].reshape(1, mid).astype(F32),
      p["se_w2"].astype(F32), p["se_b2"].reshape(1, hidden).astype(F32),
      p["w_proj"].astype(BF16))


# ----------------------------- fused head output ------------------------------
# Final BN of both branches' mb1 projections, the mb1 identity residuals, the
# two 1x1 output convs (with bias) and the channel concat -- one kernel, one
# lane-dense (4*reg_max + nc) store.


def _head_kernel(pa_ref, sta_ref, ga_ref, bea_ref, ra_ref,
                 pb_ref, stb_ref, gb_ref, beb_ref, rb_ref,
                 wa_ref, biasa_ref, wb_ref, biasb_ref, o_ref, *, total, eps):
    sca, sha = _bn_coeffs(sta_ref[...], ga_ref[...], bea_ref[...], total, eps)
    scb, shb = _bn_coeffs(stb_ref[...], gb_ref[...], beb_ref[...], total, eps)
    a = pa_ref[...].astype(F32) * sca + sha + ra_ref[...].astype(F32)
    b = pb_ref[...].astype(F32) * scb + shb + rb_ref[...].astype(F32)
    ya = jnp.dot(a.astype(BF16), wa_ref[...],
                 preferred_element_type=F32) + biasa_ref[...]
    yb = jnp.dot(b.astype(BF16), wb_ref[...],
                 preferred_element_type=F32) + biasb_ref[...]
    o_ref[...] = jnp.concatenate([ya, yb], axis=-1).astype(o_ref.dtype)


def head_out(pa, sta, bnp_a, resa, wa, biasa,
             pb, stb, bnp_b, resb, wb, biasb, total):
    N, HW, ca = pa.shape
    cb = pb.shape[-1]
    na, nb = wa.shape[1], wb.shape[1]
    tr = HW if HW <= ROW_TILE else ROW_TILE
    nr = pl.cdiv(HW, tr)
    ga, bea = bnp_a
    gb, beb = bnp_b
    return pl.pallas_call(
        functools.partial(_head_kernel, total=total, eps=BN_EPS),
        out_shape=jax.ShapeDtypeStruct((N, HW, na + nb), F32),
        grid=(N, nr),
        in_specs=[pl.BlockSpec((None, tr, ca), lambda n, r: (n, r, 0)),
                  pl.BlockSpec((N, 2, ca), lambda n, r: (0, 0, 0)),
                  pl.BlockSpec((1, ca), lambda n, r: (0, 0)),
                  pl.BlockSpec((1, ca), lambda n, r: (0, 0)),
                  pl.BlockSpec((None, tr, ca), lambda n, r: (n, r, 0)),
                  pl.BlockSpec((None, tr, cb), lambda n, r: (n, r, 0)),
                  pl.BlockSpec((N, 2, cb), lambda n, r: (0, 0, 0)),
                  pl.BlockSpec((1, cb), lambda n, r: (0, 0)),
                  pl.BlockSpec((1, cb), lambda n, r: (0, 0)),
                  pl.BlockSpec((None, tr, cb), lambda n, r: (n, r, 0)),
                  pl.BlockSpec((ca, na), lambda n, r: (0, 0)),
                  pl.BlockSpec((1, na), lambda n, r: (0, 0)),
                  pl.BlockSpec((cb, nb), lambda n, r: (0, 0)),
                  pl.BlockSpec((1, nb), lambda n, r: (0, 0))],
        out_specs=pl.BlockSpec((None, tr, na + nb), lambda n, r: (n, r, 0)),
        compiler_params=_cparams("parallel", "parallel"),
    )(pa, sta, ga.reshape(1, ca).astype(F32), bea.reshape(1, ca).astype(F32),
      resa,
      pb, stb, gb.reshape(1, cb).astype(F32), beb.reshape(1, cb).astype(F32),
      resb,
      wa.astype(BF16), biasa.reshape(1, na).astype(F32),
      wb.astype(BF16), biasb.reshape(1, nb).astype(F32))


# ----------------------------- MBConv / head orchestration --------------------


def mbconv_block(x, p, fused, H, W, total, bn_prev=None, res_prev=None):
    """One training-mode MBConv.  `x` is the raw (pre-BN) output of the previous
    block's projection (with bn_prev = its stats/params), or the already
    normalized block input when bn_prev is None.  Returns (z, p_raw, st_p):
    z = this block's normalized input (residual source for the next consumer),
    p_raw / st_p = raw projection output + its BN stats (BN folded downstream)."""
    if fused:
        z, t_raw, st0 = conv3x3(x, p["w_exp3"], H, W, bn_prev=bn_prev,
                                residual=res_prev)
        p_raw, st_p = se_proj(t_raw, st0, p["bn0_g"], p["bn0_b"], p, total)
    else:
        z, t_raw, st0 = expand1x1(x, p["w_exp1"], bn_prev=bn_prev,
                                  residual=res_prev)
        u_raw, st1 = dwconv3x3(t_raw, st0, p["bn0_g"], p["bn0_b"], p["w_dw"],
                               H, W, total)
        p_raw, st_p = se_proj(u_raw, st1, p["bn1_g"], p["bn1_b"], p, total)
    if z is None:
        z = x
    return z, p_raw, st_p


def _init_mbconv(key, inp, oup, expand_ratio, fused, std=0.05):
    hidden = int(round(inp * expand_ratio))
    mid = _make_divisible(inp // 4, 8)
    ks = jax.random.split(key, 16)

    def nrm(k, shape):
        return std * jax.random.normal(k, shape, F32)

    def bn(kg, kb, c):
        return (1.0 + 0.1 * jax.random.normal(kg, (c,), F32),
                0.1 * jax.random.normal(kb, (c,), F32))

    p = {}
    if fused:
        p["w_exp3"] = nrm(ks[0], (9, inp, hidden))       # taps ordered (ky, kx)
        p["bn0_g"], p["bn0_b"] = bn(ks[1], ks[2], hidden)
    else:
        p["w_exp1"] = nrm(ks[0], (inp, hidden))
        p["bn0_g"], p["bn0_b"] = bn(ks[1], ks[2], hidden)
        p["w_dw"] = nrm(ks[3], (9, 1, hidden))
        p["bn1_g"], p["bn1_b"] = bn(ks[4], ks[5], hidden)
    p["se_w1"] = nrm(ks[6], (hidden, mid))
    p["se_b1"] = nrm(ks[7], (mid,))
    p["se_w2"] = nrm(ks[8], (mid, hidden))
    p["se_b2"] = nrm(ks[9], (hidden,))
    p["w_proj"] = nrm(ks[10], (hidden, oup))
    p["bnp_g"], p["bnp_b"] = bn(ks[11], ks[12], oup)
    return p


class DetectMBConvHeadPallas:
    """JAX/Pallas port of Detect_MBConvHead (training-mode forward)."""

    def __init__(self, nc=80, ch=(), key=jax.random.PRNGKey(0)):
        self.nc = nc
        self.nl = len(ch)
        self.reg_max = 16
        self.no = nc + 4 * self.reg_max
        c2 = max(16, ch[0] // 4, self.reg_max * 4)
        c3 = max(ch[0], min(self.nc, 100))
        self.c2, self.c3 = c2, c3
        std = 0.05
        self.params = []
        for li, x in enumerate(ch):
            k = jax.random.fold_in(key, li)
            ks = jax.random.split(k, 10)
            cv2 = {
                "mb0": _init_mbconv(ks[0], x, c2, 4, fused=False),
                "mb1": _init_mbconv(ks[1], c2, c2, 2, fused=False),
                "w_out": std * jax.random.normal(ks[2], (c2, 4 * self.reg_max), F32),
                "b_out": std * jax.random.normal(ks[3], (4 * self.reg_max,), F32),
            }
            cv3 = {
                "mb0": _init_mbconv(ks[4], x, c3, 6, fused=True),
                "mb1": _init_mbconv(ks[5], c3, c3, 4, fused=True),
                "w_out": std * jax.random.normal(ks[6], (c3, self.nc), F32),
                "b_out": std * jax.random.normal(ks[7], (self.nc,), F32),
            }
            self.params.append((cv2, cv3))

    @staticmethod
    def _branch(x, bp, fused, H, W, total):
        inp = x.shape[-1]
        mb0, mb1 = bp["mb0"], bp["mb1"]
        oup0 = mb0["w_proj"].shape[1]
        z0, p0, st0 = mbconv_block(x, mb0, fused, H, W, total)
        res1 = z0 if inp == oup0 else None                # mb0 identity residual
        bn_prev = (st0, mb0["bnp_g"], mb0["bnp_b"], total)
        z1, p1, st1 = mbconv_block(p0, mb1, fused, H, W, total,
                                   bn_prev=bn_prev, res_prev=res1)
        # mb1 always has inp == oup -> its identity residual (z1) and its final
        # BN are folded into the head kernel.
        return z1, p1, st1

    def __call__(self, xs_nchw):
        outs = []
        for (cv2, cv3), x_nchw in zip(self.params, xs_nchw):
            N, C, H, W = x_nchw.shape
            total = float(N * H * W)
            x = jnp.transpose(x_nchw, (0, 2, 3, 1)).reshape(N, H * W, C).astype(BF16)

            za, pa, sta = self._branch(x, cv2, False, H, W, total)
            zb, pb, stb = self._branch(x, cv3, True, H, W, total)

            y = head_out(pa, sta, (cv2["mb1"]["bnp_g"], cv2["mb1"]["bnp_b"]), za,
                         cv2["w_out"], cv2["b_out"],
                         pb, stb, (cv3["mb1"]["bnp_g"], cv3["mb1"]["bnp_b"]), zb,
                         cv3["w_out"], cv3["b_out"], total)
            y = y.reshape(N, H, W, self.no)
            outs.append(jnp.transpose(y, (0, 3, 1, 2)))   # back to NCHW
        return outs


if __name__ == "__main__":
    key = jax.random.PRNGKey(0)
    nc = 80
    ch = (32,)              # one detection level with 32 input channels
    B, H, W = 2, 8, 8

    head = DetectMBConvHeadPallas(nc=nc, ch=ch, key=jax.random.fold_in(key, 1000))
    xs = [0.1 * jax.random.normal(jax.random.fold_in(key, i), (B, c, H, W), F32)
          for i, c in enumerate(ch)]

    outs = head(xs)
    outs = jax.block_until_ready(outs)

    for o in outs:
        assert o.shape == (B, nc + 4 * 16, H, W), o.shape
        assert bool(jnp.all(jnp.isfinite(o)))
    print("KERNEL_OK")
</pallas_src>

<mosaic_0001>
module attributes {stable_mosaic.version = 11 : i64} {
  func.func @_expand1x1_kernel(%arg0: i32, %arg1: i32, %arg2: memref<1x64x32xbf16, #tpu.memory_space<vmem>>, %arg3: memref<32x128xbf16, #tpu.memory_space<vmem>>, %arg4: memref<1x64x128xbf16, #tpu.memory_space<vmem>>, %arg5: memref<1x2x128xf32, #tpu.memory_space<vmem>>) attributes {dimension_semantics = [#tpu.dimension_semantics<parallel>, #tpu.dimension_semantics<arbitrary>], iteration_bounds = array<i64: 2, 1>, scalar_prefetch = 0 : i64, scratch_operands = 0 : i64, tpu.core_type = #tpu.core_type<tc>, window_params = [{transform_indices = @transform_0, window_bounds = array<i64: 1, 64, 32>}, {pipeline_mode = #tpu.pipeline_mode<synchronous>, transform_indices = @transform_1, window_bounds = array<i64: 32, 128>}, {transform_indices = @transform_2, window_bounds = array<i64: 1, 64, 128>}, {transform_indices = @transform_3, window_bounds = array<i64: 1, 2, 128>}]} {
    %c0 = arith.constant 0 : index
    %c0_0 = arith.constant 0 : index
    %c0_1 = arith.constant 0 : index
    %0 = vector.load %arg2[%c0, %c0_0, %c0_1] : memref<1x64x32xbf16, #tpu.memory_space<vmem>>, vector<1x64x32xbf16>
    %1 = vector.shape_cast %0 : vector<1x64x32xbf16> to vector<64x32xbf16>
    %c0_2 = arith.constant 0 : index
    %c0_3 = arith.constant 0 : index
    %2 = vector.load %arg3[%c0_2, %c0_3] : memref<32x128xbf16, #tpu.memory_space<vmem>>, vector<32x128xbf16>
    %cst = arith.constant dense<0.000000e+00> : vector<64x128xf32>
    %3 = tpu.matmul %1, %2, %cst {dimension_numbers = #tpu.dot_dimension_numbers<[1], [0], [0], [1], [0, 0, 1, 1], [], []>} : vector<64x32xbf16>, vector<32x128xbf16>, vector<64x128xf32> -> vector<64x128xf32>
    %4 = arith.truncf %3 : vector<64x128xf32> to vector<64x128xbf16>
    %c0_4 = arith.constant 0 : index
    %c0_5 = arith.constant 0 : index
    %c0_6 = arith.constant 0 : index
    %5 = vector.load %arg4[%c0_4, %c0_5, %c0_6] : memref<1x64x128xbf16, #tpu.memory_space<vmem>>, vector<1x64x128xbf16>
    %6 = vector.shape_cast %5 : vector<1x64x128xbf16> to vector<64x128xbf16>
    %7 = vector.shape_cast %4 : vector<64x128xbf16> to vector<1x64x128xbf16>
    tpu.vector_store %arg4[%c0_4, %c0_5, %c0_6], %7 {strides = array<i32>} : memref<1x64x128xbf16, #tpu.memory_space<vmem>>, vector<1x64x128xbf16>,
    %c0_i32 = arith.constant 0 : i32
    %8 = arith.cmpi eq, %arg1, %c0_i32 : i32
    %9 = arith.extui %8 : i1 to i32
    %c0_i32_7 = arith.constant 0 : i32
    %10 = arith.cmpi ne, %9, %c0_i32_7 : i32
    scf.if %10 {
      %cst_19 = arith.constant 0.000000e+00 : f32
      %36 = vector.broadcast %cst_19 : f32 to vector<2x128xf32>
      %c0_20 = arith.constant 0 : index
      %c0_21 = arith.constant 0 : index
      %c0_22 = arith.constant 0 : index
      %37 = vector.load %arg5[%c0_20, %c0_21, %c0_22] : memref<1x2x128xf32, #tpu.memory_space<vmem>>, vector<1x2x128xf32>
      %38 = vector.shape_cast %37 : vector<1x2x128xf32> to vector<2x128xf32>
      %39 = vector.shape_cast %36 : vector<2x128xf32> to vector<1x2x128xf32>
      tpu.vector_store %arg5[%c0_20, %c0_21, %c0_22], %39 {strides = array<i32>} : memref<1x2x128xf32, #tpu.memory_space<vmem>>, vector<1x2x128xf32>,
    } else {
    }
    %c0_8 = arith.constant 0 : index
    %c0_9 = arith.constant 0 : index
    %c0_10 = arith.constant 0 : index
    %11 = vector.load %arg5[%c0_8, %c0_9, %c0_10] : memref<1x2x128xf32, #tpu.memory_space<vmem>>, vector<1x2x128xf32>
    %12 = vector.shape_cast %11 : vector<1x2x128xf32> to vector<2x128xf32>
    %c64_i32 = arith.constant 64 : i32
    %13 = arith.muli %arg1, %c64_i32 : i32
    %c64_i32_11 = arith.constant 64 : i32
    %14 = arith.subi %c64_i32_11, %13 : i32
    %15 = tpu.iota {dimensions = array<i32: 0>} : vector<64x1xi32>
    %16 = vector.broadcast %14 : i32 to vector<64x1xi32>
    %17 = arith.cmpi slt, %15, %16 : vector<64x1xi32>
    %cst_12 = arith.constant 0.000000e+00 : f32
    %18 = vector.shape_cast %17 : vector<64x1xi1> to vector<64x1xi1>
    %19 = vector.broadcast %18 : vector<64x1xi1> to vector<64x128xi1>
    %20 = vector.broadcast %cst_12 : f32 to vector<64x128xf32>
    %21 = arith.select %19, %3, %20 : vector<64x128xi1>, vector<64x128xf32>
    %cst_13 = arith.constant dense<0.000000e+00> : vector<128xf32>
    %22 = vector.multi_reduction <add>, %21, %cst_13 [0] : vector<64x128xf32> to vector<128xf32>
    %23 = vector.shape_cast %22 : vector<128xf32> to vector<1x128xf32>
    %24 = arith.mulf %3, %3 : vector<64x128xf32>
    %cst_14 = arith.constant 0.000000e+00 : f32
    %25 = vector.shape_cast %17 : vector<64x1xi1> to vector<64x1xi1>
    %26 = vector.broadcast %25 : vector<64x1xi1> to vector<64x128xi1>
    %27 = vector.broadcast %cst_14 : f32 to vector<64x128xf32>
    %28 = arith.select %26, %24, %27 : vector<64x128xi1>, vector<64x128xf32>
    %cst_15 = arith.constant dense<0.000000e+00> : vector<128xf32>
    %29 = vector.multi_reduction <add>, %28, %cst_15 [0] : vector<64x128xf32> to vector<128xf32>
    %30 = vector.shape_cast %29 : vector<128xf32> to vector<1x128xf32>
    %31 = tpu.concatenate %23, %30 in 0 : vector<1x128xf32>, vector<1x128xf32> -> vector<2x128xf32>
    %32 = arith.addf %12, %31 : vector<2x128xf32>
    %c0_16 = arith.constant 0 : index
    %c0_17 = arith.constant 0 : index
    %c0_18 = arith.constant 0 : index
    %33 = vector.load %arg5[%c0_16, %c0_17, %c0_18] : memref<1x2x128xf32, #tpu.memory_space<vmem>>, vector<1x2x128xf32>
    %34 = vector.shape_cast %33 : vector<1x2x128xf32> to vector<2x128xf32>
    %35 = vector.shape_cast %32 : vector<2x128xf32> to vector<1x2x128xf32>
    tpu.vector_store %arg5[%c0_16, %c0_17, %c0_18], %35 {strides = array<i32>} : memref<1x2x128xf32, #tpu.memory_space<vmem>>, vector<1x2x128xf32>,
    return
  }
  func.func @transform_0(%arg0: i32, %arg1: i32) -> (i32, i32, i32) {
    %c0_i32 = arith.constant 0 : i32
    %c0_i32_0 = arith.constant 0 : i32
    return %arg0, %arg1, %c0_i32 : i32, i32, i32
  }
  func.func @transform_1(%arg0: i32, %arg1: i32) -> (i32, i32) {
    %c0_i32 = arith.constant 0 : i32
    %c0_i32_0 = arith.constant 0 : i32
    %c0_i32_1 = arith.constant 0 : i32
    return %c0_i32, %c0_i32_0 : i32, i32
  }
  func.func @transform_2(%arg0: i32, %arg1: i32) -> (i32, i32, i32) {
    %c0_i32 = arith.constant 0 : i32
    %c0_i32_0 = arith.constant 0 : i32
    return %arg0, %arg1, %c0_i32 : i32, i32, i32
  }
  func.func @transform_3(%arg0: i32, %arg1: i32) -> (i32, i32, i32) {
    %c0_i32 = arith.constant 0 : i32
    %c0_i32_0 = arith.constant 0 : i32
    %c0_i32_1 = arith.constant 0 : i32
    return %arg0, %c0_i32, %c0_i32_0 : i32, i32, i32
  }
}

</mosaic_0001>

<llo_original>
// kernel: tpu_custom_call.1
$region0: #{tpu_custom_call.1}
  #allocation0 [shape = 'u32[]', space=smem, size = 0x4, offset = 0x4, fixed_abs, tag = 'smem constant byte address 0x4 - core index']
  #allocation1 [shape = 'u32[144,128]{1,0:T(1,128)}', space=vmem, size = 0x12000, scoped, tag = 'internal scratch']
  %s0 = inlined_call_operand.vmem [shape: bf16[2,64,32], index: 0, kind: input, shape index: {}]
  %s1 = inlined_call_operand.vmem [shape: bf16[32,128], index: 1, kind: input, shape index: {}]
  %s2 = inlined_call_operand.hbm [shape: bf16[2,64,128], index: 2, kind: output, shape index: {0}]
  %s3 = inlined_call_operand.hbm [shape: f32[2,2,128], index: 3, kind: output, shape index: {1}]
  %4 = xla_tuple %s2, %s3
  %s5 = sld [smem:[#allocation0]]
  $region53: #{tpu_custom_call.1} parent=0
    _
  %s7 = ssub.s32 1, %s5
  %s8 = scalar_select 0, %s7, %s5
  $region1: #{tpu_custom_call.1} parent=0
    #allocation2 [shape = 'u8[32768]{0}', space=vmem, size = 0x8000, scoped, tag = 'output window, operand 0']
    #allocation3 [shape = 's32[2]{0}', space=sflag, size = 0x8, scoped, tag = 'scoped memory for tpu_custom_call.1']
    #allocation4 [shape = 'u8[2048]{0}', space=vmem, size = 0x800, scoped, tag = 'output window, operand 1']
    #allocation5 [shape = 's32[2]{0}', space=sflag, size = 0x8, scoped, tag = 'scoped memory for tpu_custom_call.1']
    %9 = vsyncpa [#allocation3], 0
    %s10 = scalar_lea.sflag [#allocation3], 1
    %11 = vsyncpa %s10, 0
    %12 = vsyncpa [#allocation5], 0
    %s13 = scalar_lea.sflag [#allocation5], 1
    %14 = vsyncpa %s13, 0
    loop: start=0, step=1, limit=4
    $region2: #{tpu_custom_call.1} parent=1 // loop_pre_header
      _
    $region3: #{tpu_custom_call.1} parent=1 // loop_header
      %s16 = sphi 0, %s20
      %p17 = scmp.ge.s32.totalorder %s16, 4
      %s23 = sphi 0, %s35
      %s24 = sphi 0, %s31
      %s25 = sphi 0, %s23
      %s26 = sphi 0, %s24
      %s27 = sphi 0, %s25
      %s28 = sphi 0, %s26
      %s40 = sphi 0, %s42
      %s43 = sphi 0, %s40
      %s44 = sphi 0, %s43
      %s60 = sphi 0, %s44
      %s64 = sphi 0, %s64
      %s66 = sphi 0, %s64
      %s67 = sphi 0, %s66
      %s81 = sphi 0, %s67
      %s89 = sphi 0, %s91
      %s92 = sphi 0, %s89
      %s93 = sphi 0, %s92
      %s109 = sphi 0, %s93
      %s115 = sphi 0, %s117
      %s118 = sphi 0, %s115
      %s119 = sphi 0, %s118
      %s135 = sphi 0, %s119
    $region4: #{tpu_custom_call.1} parent=1 // loop_header_branch
      %19 = sbr.rel (%p17) target = $region8
    $region5: #{tpu_custom_call.1} parent=1 // loop_body
      %s21 = ssub.s32 %s16, 1
      %s22 = ssub.s32 %s16, 2
      %s29 = sadd.s32 1, %s24
      %p30 = scmp.ge.s32.totalorder %s29, 1
      %s31 = scalar_select %p30, 0, %s29
      %s32 = sadd.s32 1, %s23
      %s33 = scalar_select %p30, %s32, %s23
      %p34 = scmp.ge.s32.totalorder %s33, 2
      %s35 = scalar_select %p34, 0, %s33
      %s36 = ssub.s32 %s23, %s35
      %s37 = ssub.s32 %s24, %s31
      %s38 = sor.u32 %s36, %s37
      %p39 = scmp.eq.s32.totalorder %s38, 0
      %s41 = sadd.s32 %s40, 1
      %s42 = scalar_select %p39, %s40, %s41
      %p45 = pneg %p39
      %p46 = scmp.eq.s32.totalorder %s16, 1
      %p47 = por %p45, %p46
      %p48 = scmp.ne.s32.totalorder %s40, %s43
      %p49 = scmp.eq.s32.totalorder %s16, 0
      %p50 = por %p48, %p49
      %p51 = scmp.ne.s32.totalorder %s40, %s43
      %p52 = scmp.eq.s32.totalorder %s21, 1
      %p53 = por %p51, %p52
      %p54 = scmp.ne.s32.totalorder %s43, %s44
      %p55 = scmp.eq.s32.totalorder %s21, 0
      %p56 = por %p54, %p55
      %p57 = scmp.ne.s32.totalorder %s43, %s44
      %p58 = scmp.eq.s32.totalorder %s22, 1
      %p59 = por %p57, %p58
      %p61 = scmp.ne.s32.totalorder %s44, %s60
      %p62 = scmp.eq.s32.totalorder %s22, 0
      %p63 = por %p61, %p62
      %s65 = sadd.s32 %s64, 1
      %p68 = scmp.eq.s32.totalorder %s16, 1
      %p69 = scmp.ne.s32.totalorder %s64, %s66
      %p70 = scmp.eq.s32.totalorder %s16, 0
      %p71 = por %p69, %p70
      %p72 = scmp.ne.s32.totalorder %s64, %s66
      %p73 = scmp.eq.s32.totalorder %s21, 1
      %p74 = por %p72, %p73
      %p75 = scmp.ne.s32.totalorder %s66, %s67
      %p76 = scmp.eq.s32.totalorder %s21, 0
      %p77 = por %p75, %p76
      %p78 = scmp.ne.s32.totalorder %s66, %s67
      %p79 = scmp.eq.s32.totalorder %s22, 1
      %p80 = por %p78, %p79
      %p82 = scmp.ne.s32.totalorder %s67, %s81
      %p83 = scmp.eq.s32.totalorder %s22, 0
      %p84 = por %p82, %p83
      %s85 = ssub.s32 %s23, %s35
      %s86 = ssub.s32 %s24, %s31
      %s87 = sor.u32 %s85, %s86
      %p88 = scmp.eq.s32.totalorder %s87, 0
      %s90 = sadd.s32 %s89, 1
      %s91 = scalar_select %p88, %s89, %s90
      %p94 = pneg %p88
      %p95 = scmp.eq.s32.totalorder %s16, 1
      %p96 = por %p94, %p95
      %p97 = scmp.ne.s32.totalorder %s89, %s92
      %p98 = scmp.eq.s32.totalorder %s16, 0
      %p99 = por %p97, %p98
      %p100 = scmp.ne.s32.totalorder %s89, %s92
      %p101 = scmp.eq.s32.totalorder %s21, 1
      %p102 = por %p100, %p101
      %p103 = scmp.ne.s32.totalorder %s92, %s93
      %p104 = scmp.eq.s32.totalorder %s21, 0
      %p105 = por %p103, %p104
      %p106 = scmp.ne.s32.totalorder %s92, %s93
      %p107 = scmp.eq.s32.totalorder %s22, 1
      %p108 = por %p106, %p107
      %p110 = scmp.ne.s32.totalorder %s93, %s109
      %p111 = scmp.eq.s32.totalorder %s22, 0
      %p112 = por %p110, %p111
      %s113 = ssub.s32 %s23, %s35
      %p114 = scmp.eq.s32.totalorder %s113, 0
      %s116 = sadd.s32 %s115, 1
      %s117 = scalar_select %p114, %s115, %s116
      %p120 = pneg %p114
      %p121 = scmp.eq.s32.totalorder %s16, 1
      %p122 = por %p120, %p121
      %p123 = scmp.ne.s32.totalorder %s115, %s118
      %p124 = scmp.eq.s32.totalorder %s16, 0
      %p125 = por %p123, %p124
      %p126 = scmp.ne.s32.totalorder %s115, %s118
      %p127 = scmp.eq.s32.totalorder %s21, 1
      %p128 = por %p126, %p127
      %p129 = scmp.ne.s32.totalorder %s118, %s119
      %p130 = scmp.eq.s32.totalorder %s21, 0
      %p131 = por %p129, %p130
      %p132 = scmp.ne.s32.totalorder %s118, %s119
      %p133 = scmp.eq.s32.totalorder %s22, 1
      %p134 = por %p132, %p133
      %p136 = scmp.ne.s32.totalorder %s119, %s135
      %p137 = scmp.eq.s32.totalorder %s22, 0
      %p138 = por %p136, %p137
      %p139 = scmp.le.s32.totalorder 1, %s16
      %p140 = scmp.lt.s32.totalorder %s16, 3
      %p141 = pnand %p139, %p140
      %p142 = pneg %p141
      // Predicated region
      $region9: #{tpu_custom_call.1} parent=5 // pred_check
        _
      $region10: #{tpu_custom_call.1} parent=5 // pred_check_branch
        %144 = sbr.rel (%p141) target = $region12
      $region11: #{tpu_custom_call.1} parent=5 // pred_region
        %s145 = ssub.s32 %s16, 1
        // Predicated region
        $region13: #{tpu_custom_call.1} parent=11 // pred_check
          %p146 = pneg %p77
        $region14: #{tpu_custom_call.1} parent=11 // pred_check_branch
          %148 = sbr.rel (%p146) target = $region16
        $region15: #{tpu_custom_call.1} parent=11 // pred_region
          _
        $region16: #{tpu_custom_call.1} parent=11 // pred_fallthru
          _
      $region12: #{tpu_custom_call.1} parent=5 // pred_fallthru
        _
      %p149 = scmp.lt.s32.totalorder %s16, 2
      // Predicated region
      $region17: #{tpu_custom_call.1} parent=5 // pred_check
        %p150 = pneg %p149
      $region18: #{tpu_custom_call.1} parent=5 // pred_check_branch
        %152 = sbr.rel (%p150) target = $region20
      $region19: #{tpu_custom_call.1} parent=5 // pred_region
        // Predicated region
        $region21: #{tpu_custom_call.1} parent=19 // pred_check
          %p153 = pneg %p50
        $region22: #{tpu_custom_call.1} parent=19 // pred_check_branch
          %155 = sbr.rel (%p153) target = $region24
        $region23: #{tpu_custom_call.1} parent=19 // pred_region
          %s156 = smul.u32 8, %s24
          %p157 = scmp.lt.s32.totalorder %s23, 1
          %s158 = scalar_select %p157, %s23, 1
          %p159 = scmp.lt.s32.totalorder %s156, 7
          %s160 = scalar_select %p159, %s156, 7
          %s161 = smul.addr %s158, 8
          %s162 = sadd.s32 %s160, %s161
          %s163 = smul.addr %s162, 4
          %s164 = scalar_lea.vmem %s0, %s163
          %s165 = smul.u32 8, %s24
        $region24: #{tpu_custom_call.1} parent=19 // pred_fallthru
          _
      $region20: #{tpu_custom_call.1} parent=5 // pred_fallthru
        _
      %p166 = scmp.le.s32.totalorder 1, %s16
      %p167 = scmp.lt.s32.totalorder %s16, 3
      %p168 = pnand %p166, %p167
      %p169 = pneg %p168
      // Predicated region
      $region25: #{tpu_custom_call.1} parent=5 // pred_check
        _
      $region26: #{tpu_custom_call.1} parent=5 // pred_check_branch
        %171 = sbr.rel (%p168) target = $region28
      $region27: #{tpu_custom_call.1} parent=5 // pred_region
        %s172 = ssub.s32 %s16, 1
        %s173 = smul.u32 8, %s26
        %p174 = scmp.lt.s32.totalorder %s25, 1
        %s175 = scalar_select %p174, %s25, 1
        %p176 = scmp.lt.s32.totalorder %s173, 7
        %s177 = scalar_select %p176, %s173, 7
        %s178 = smul.addr %s175, 8
        %s179 = sadd.s32 %s177, %s178
        %s180 = smul.addr %s179, 4
        %s181 = scalar_lea.vmem %s0, %s180
        %p182 = pneg %p56
        %p183 = pneg %p53
        %p184 = pneg %p77
        %p185 = pneg %p74
        %p186 = pneg %p105
        %p187 = pneg %p102
        %s188 = sand.u32 %s92, 1
        %s189 = scalar_lea.sflag [#allocation3], %s188
        %s190 = sand.u32 %s92, 1
        %s191 = smul.addr %s190, 32
        %s192 = scalar_lea.vmem [#allocation2], %s191
        %p193 = pneg %p131
        %p194 = pneg %p128
        %s195 = sand.u32 %s118, 1
        %s196 = scalar_lea.sflag [#allocation5], %s195
        %s197 = sand.u32 %s118, 1
        %s198 = smul.addr %s197, 2
        %s199 = scalar_lea.vmem [#allocation4], %s198
        %s200 = smul.u32 8, %s26
        %p201 = scmp.lt.s32.totalorder %s25, 1
        %s202 = scalar_select %p201, %s25, 1
        %p203 = scmp.lt.s32.totalorder %s200, 7
        %s204 = scalar_select %p203, %s200, 7
        %s205 = smul.addr %s202, 8
        %s206 = sadd.s32 %s204, %s205
        %s207 = smul.addr %s206, 4
        %s208 = scalar_lea.vmem %s0, %s207
        %s209 = smul.u32 8, %s26
        %s210 = smul.u32 8, %s26
        %v212 = vld [vmem:[%s208] sm:$0xf]
        %v213 = vld [vmem:[%s208 + $0x4] sm:$0xf]
        %v214 = vld [vmem:[%s208 + $0x8] sm:$0xf]
        %v215 = vld [vmem:[%s208 + $0xc] sm:$0xf]
        %v216 = vld [vmem:[%s208 + $0x10] sm:$0xf]
        %v217 = vld [vmem:[%s208 + $0x14] sm:$0xf]
        %v218 = vld [vmem:[%s208 + $0x18] sm:$0xf]
        %v219 = vld [vmem:[%s208 + $0x1c] sm:$0xf]
        %v220 = vld [vmem:[%s1] sm:$0xf]
        %v221 = vld [vmem:[%s1 + $0x4] sm:$0xf]
        %v222 = vld [vmem:[%s1 + $0x8] sm:$0xf]
        %v223 = vld [vmem:[%s1 + $0xc] sm:$0xf]
        %v232 = vunpack.c.l.b16 %v212
        %v233 = vunpack.c.l.b16 %v213
        %v234 = vunpack.c.l.b16 %v214
        %v235 = vunpack.c.l.b16 %v215
        %v236 = vunpack.c.l.b16 %v216
        %v237 = vunpack.c.l.b16 %v217
        %v238 = vunpack.c.l.b16 %v218
        %v239 = vunpack.c.l.b16 %v219
        %v240 = vpack.c.b16 %v233, %v232
        %v241 = vpack.c.b16 %v235, %v234
        %v242 = vpack.c.b16 %v237, %v236
        %v243 = vpack.c.b16 %v239, %v238
        %v248 = vunpack.c.l.b16 %v220
        %v249 = vunpack.c.l.b16 %v221
        %v250 = vunpack.c.l.b16 %v222
        %v251 = vunpack.c.l.b16 %v223
        %v252 = vpack.c.b16 %v249, %v248
        %v253 = vpack.c.b16 %v251, %v250
        %vm256 = vcmask 261120
        %v258 = vsel %vm256, %v240, 0
        %v261 = vsel %vm256, %v241, 0
        %v264 = vsel %vm256, %v242, 0
        %v267 = vsel %vm256, %v243, 0
        %269 = vmatprep.subr.bf16.mxu0 0
        %270 = vmatpush1.bf16.msra.mxu0 0
        %271 = vmatprep.subr.bf16.mxu0 0
        %272 = vmatpush1.bf16.msra.mxu0 0
        %273 = vmatprep.subr.bf16.mxu0 0
        %274 = vmatpush1.bf16.msra.mxu0 0
        %275 = vmatprep.subr.bf16.mxu0 0
        %276 = vmatpush1.bf16.msra.mxu0 0
        %277 = vmatprep.subr.bf16.mxu0 0
        %278 = vmatpush1.bf16.msra.mxu0 0
        %279 = vmatprep.subr.bf16.mxu0 0
        %280 = vmatpush1.bf16.msra.mxu0 0
        %281 = vmatprep.subr.bf16.mxu0 0
        %282 = vmatpush1.bf16.msra.mxu0 %v253
        %283 = vmatprep.subr.bf16.mxu0 0
        %284 = vmatpush1.bf16.msra.mxu0 %v252
        %285 = vmatprep.subr.bf16.mxu0 0
        %286 = vmatpush2.bf16.msra.mxu0 0
        %287 = vmatprep.subr.bf16.mxu0 0
        %288 = vmatpush2.bf16.msra.mxu0 0
        %289 = vmatprep.subr.bf16.mxu0 0
        %290 = vmatpush2.bf16.msra.mxu0 0
        %291 = vmatprep.subr.bf16.mxu0 0
        %292 = vmatpush2.bf16.msra.mxu0 0
        %293 = vmatprep.subr.bf16.mxu0 0
        %294 = vmatpush2.bf16.msra.mxu0 0
        %295 = vmatprep.subr.bf16.mxu0 0
        %296 = vmatpush2.bf16.msra.mxu0 0
        %297 = vmatprep.subr.bf16.mxu0 0
        %298 = vmatpush2.bf16.msra.mxu0 0
        %299 = vmatprep.subr.bf16.mxu0 0
        %300 = vmatpush2.bf16.msra.mxu0 0
        %301 = vmatprep.mubr.bf16.mxu0 0
        %302 = vmatmul.mubr.bf16.gmra.mxu0 %v258
        %v303 = vpop.f32.mrf.mxu0
        %v304 = vadd.f32 0.0, %v303
        %v305 = vpop.f32.mrf.mxu0
        %v306 = vpop.f32.mrf.mxu0
        %v307 = vadd.f32 0.0, %v306
        %v308 = vpop.f32.mrf.mxu0
        %309 = vmatprep.mubr.bf16.mxu0 0
        %310 = vmatmul.mubr.bf16.gmra.mxu0 %v261
        %v311 = vpop.f32.mrf.mxu0
        %v312 = vadd.f32 0.0, %v311
        %v313 = vpop.f32.mrf.mxu0
        %v314 = vpop.f32.mrf.mxu0
        %v315 = vadd.f32 0.0, %v314
        %v316 = vpop.f32.mrf.mxu0
        %317 = vmatprep.mubr.bf16.mxu0 0
        %318 = vmatmul.mubr.bf16.gmra.mxu0 %v264
        %v319 = vpop.f32.mrf.mxu0
        %v320 = vadd.f32 0.0, %v319
        %v321 = vpop.f32.mrf.mxu0
        %v322 = vpop.f32.mrf.mxu0
        %v323 = vadd.f32 0.0, %v322
        %v324 = vpop.f32.mrf.mxu0
        %325 = vmatprep.mubr.bf16.mxu0 0
        %326 = vmatmul.mubr.bf16.gmra.mxu0 %v267
        %v327 = vpop.f32.mrf.mxu0
        %v328 = vadd.f32 0.0, %v327
        %v329 = vpop.f32.mrf.mxu0
        %v330 = vpop.f32.mrf.mxu0
        %v331 = vadd.f32 0.0, %v330
        %v332 = vpop.f32.mrf.mxu0
        %333 = vdwg.mxu0
        %v334 = vpack.c.bf16 %v307, %v304
        %v335 = vpack.c.bf16 %v315, %v312
        %v336 = vpack.c.bf16 %v323, %v320
        %v337 = vpack.c.bf16 %v331, %v328
        %v342 = vunpack.c.l.b16 %v334
        %v343 = vunpack.c.h.b16 %v334
        %v344 = vunpack.c.l.b16 %v335
        %v345 = vunpack.c.h.b16 %v335
        %v346 = vunpack.c.l.b16 %v336
        %v347 = vunpack.c.h.b16 %v336
        %v348 = vunpack.c.l.b16 %v337
        %v349 = vunpack.c.h.b16 %v337
        %v350 = vpack.c.b16 %v342, %v342
        %v351 = vpack.c.b16 %v343, %v343
        %v352 = vpack.c.b16 %v344, %v344
        %v353 = vpack.c.b16 %v345, %v345
        %v354 = vpack.c.b16 %v346, %v346
        %v355 = vpack.c.b16 %v347, %v347
        %v356 = vpack.c.b16 %v348, %v348
        %v357 = vpack.c.b16 %v349, %v349
        %366 = vst [vmem:[%s192] sm:$0xf] %v350
        %367 = vst [vmem:[%s192 + $0x4] sm:$0xf] %v351
        %368 = vst [vmem:[%s192 + $0x8] sm:$0xf] %v352
        %369 = vst [vmem:[%s192 + $0xc] sm:$0xf] %v353
        %370 = vst [vmem:[%s192 + $0x10] sm:$0xf] %v354
        %371 = vst [vmem:[%s192 + $0x14] sm:$0xf] %v355
        %372 = vst [vmem:[%s192 + $0x18] sm:$0xf] %v356
        %373 = vst [vmem:[%s192 + $0x1c] sm:$0xf] %v357
        %p374 = scmp.eq.s32.totalorder %s26, 0
        // Predicated region
        $region29: #{tpu_custom_call.1} parent=27 // pred_check
          %p375 = pneg %p374
        $region30: #{tpu_custom_call.1} parent=27 // pred_check_branch
          %377 = sbr.rel (%p375) target = $region32
        $region31: #{tpu_custom_call.1} parent=27 // pred_region
          %378 = vst [vmem:[%s199] sm:$0x3] 0.0
        $region32: #{tpu_custom_call.1} parent=27 // pred_fallthru
          _
        %v379 = vld [vmem:[%s199] sm:$0x3]
        %s380 = smul.u32 %s26, 64
        %s381 = ssub.s32 64, %s380
        %v382 = vlaneseq
        %v383 = vshrl.u32 %v382, 7
        %v384 = vadd.s32 %v383, 8
        %v385 = vadd.s32 %v383, 16
        %v386 = vadd.s32 %v383, 24
        %v387 = vadd.s32 %v383, 32
        %v388 = vadd.s32 %v383, 40
        %v389 = vadd.s32 %v383, 48
        %v390 = vadd.s32 %v383, 56
        %v391 = vstv %s381
        %vm392 = vcmp.lt.s32.totalorder %v383, %v391
        %vm393 = vcmp.lt.s32.totalorder %v384, %v391
        %vm394 = vcmp.lt.s32.totalorder %v385, %v391
        %vm395 = vcmp.lt.s32.totalorder %v386, %v391
        %vm396 = vcmp.lt.s32.totalorder %v387, %v391
        %vm397 = vcmp.lt.s32.totalorder %v388, %v391
        %vm398 = vcmp.lt.s32.totalorder %v389, %v391
        %vm399 = vcmp.lt.s32.totalorder %v390, %v391
        %v400 = vsel %vm392, 1, 0
        %v401 = vsel %vm393, 1, 0
        %v402 = vsel %vm394, 1, 0
        %v403 = vsel %vm395, 1, 0
        %v404 = vsel %vm396, 1, 0
        %v405 = vsel %vm397, 1, 0
        %v406 = vsel %vm398, 1, 0
        %v407 = vsel %vm399, 1, 0
        %vm408 = vcmp.eq.s32.totalorder %v400, 1
        %vm409 = vcmp.eq.s32.totalorder %v401, 1
        %vm410 = vcmp.eq.s32.totalorder %v402, 1
        %vm411 = vcmp.eq.s32.totalorder %v403, 1
        %vm412 = vcmp.eq.s32.totalorder %v404, 1
        %vm413 = vcmp.eq.s32.totalorder %v405, 1
        %vm414 = vcmp.eq.s32.totalorder %v406, 1
        %vm415 = vcmp.eq.s32.totalorder %v407, 1
        %v416 = vsel %vm408, %v304, 0.0
        %v417 = vsel %vm409, %v307, 0.0
        %v418 = vsel %vm410, %v312, 0.0
        %v419 = vsel %vm411, %v315, 0.0
        %v420 = vsel %vm412, %v320, 0.0
        %v421 = vsel %vm413, %v323, 0.0
        %v422 = vsel %vm414, %v328, 0.0
        %v423 = vsel %vm415, %v331, 0.0
        %v424 = vadd.f32 %v416, %v417
        %v425 = vadd.f32 %v424, %v418
        %v426 = vadd.f32 %v425, %v419
        %v427 = vadd.f32 %v426, %v420
        %v428 = vadd.f32 %v427, %v421
        %v429 = vadd.f32 %v428, %v422
        %v430 = vadd.f32 %v429, %v423
        %v431 = vrot.slane %v430, 4
        %v432 = vadd.f32 %v430, %v431
        %v433 = vrot.slane %v432, 2
        %v434 = vadd.f32 %v432, %v433
        %v435 = vrot.slane %v434, 1
        %v436 = vadd.f32 %v434, %v435
        %v437 = vmul.f32 %v304, %v304
        %v438 = vmul.f32 %v307, %v307
        %v439 = vmul.f32 %v312, %v312
        %v440 = vmul.f32 %v315, %v315
        %v441 = vmul.f32 %v320, %v320
        %v442 = vmul.f32 %v323, %v323
        %v443 = vmul.f32 %v328, %v328
        %v444 = vmul.f32 %v331, %v331
        %v445 = vsel %vm408, %v437, 0.0
        %v446 = vsel %vm409, %v438, 0.0
        %v447 = vsel %vm410, %v439, 0.0
        %v448 = vsel %vm411, %v440, 0.0
        %v449 = vsel %vm412, %v441, 0.0
        %v450 = vsel %vm413, %v442, 0.0
        %v451 = vsel %vm414, %v443, 0.0
        %v452 = vsel %vm415, %v444, 0.0
        %v453 = vadd.f32 %v445, %v446
        %v454 = vadd.f32 %v453, %v447
        %v455 = vadd.f32 %v454, %v448
        %v456 = vadd.f32 %v455, %v449
        %v457 = vadd.f32 %v456, %v450
        %v458 = vadd.f32 %v457, %v451
        %v459 = vadd.f32 %v458, %v452
        %v460 = vrot.slane %v459, 4
        %v461 = vadd.f32 %v459, %v460
        %v462 = vrot.slane %v461, 2
        %v463 = vadd.f32 %v461, %v462
        %v464 = vrot.slane %v463, 1
        %v465 = vadd.f32 %v463, %v464
        %vm466 = vcmask 1040384
        %v467 = vsel %vm466, %v436, %v465
        %v468 = vadd.f32 %v379, %v467
        %469 = vst [vmem:[%s199] sm:$0x3] %v468
        %s470 = sand.u32 %s92, 1
        %s471 = scalar_lea.sflag [#allocation3], %s470
        %s472 = sand.u32 %s92, 1
        %s473 = smul.addr %s472, 32
        %s474 = scalar_lea.vmem [#allocation2], %s473
        %s475 = sand.u32 %s118, 1
        %s476 = scalar_lea.sflag [#allocation5], %s475
        %s477 = sand.u32 %s118, 1
        %s478 = smul.addr %s477, 2
        %s479 = scalar_lea.vmem [#allocation4], %s478
        // Predicated region
        $region33: #{tpu_custom_call.1} parent=27 // pred_check
          %p480 = pneg %p102
        $region34: #{tpu_custom_call.1} parent=27 // pred_check_branch
          %482 = sbr.rel (%p480) target = $region36
        $region35: #{tpu_custom_call.1} parent=27 // pred_region
          %s483 = smul.u32 8, %s26
          %s485 = ssub.s32 512, 512
          %486 = vsyncadd %s471, %s485
          %s487 = smul.addr %s25, 8
          %s488 = sadd.s32 %s483, %s487
          %s489 = smul.addr %s488, 64
          %s490 = scalar_lea.hbm %s2, %s489
          %s491 = sshll.u32 %s474, 4
          %s492 = int_to_ptr.vmem [resolvable:$true] %s491
          %497 = dma.vmem_to_hbm [thread:$0]  %s492, 512, %s490, %s471, 64, 64, 4
        $region36: #{tpu_custom_call.1} parent=27 // pred_fallthru
          _
        // Predicated region
        $region37: #{tpu_custom_call.1} parent=27 // pred_check
          %p498 = pneg %p128
        $region38: #{tpu_custom_call.1} parent=27 // pred_check_branch
          %500 = sbr.rel (%p498) target = $region40
        $region39: #{tpu_custom_call.1} parent=27 // pred_region
          %s502 = ssub.s32 32, 32
          %503 = vsyncadd %s476, %s502
          %s504 = smul.addr %s25, 32
          %s505 = scalar_lea.hbm %s3, %s504
          %s507 = sshll.u32 %s479, 4
          %s508 = int_to_ptr.vmem [resolvable:$true] %s507
          %510 = dma.vmem_to_hbm [thread:$0]  %s508, 32, %s505, %s476
        $region40: #{tpu_custom_call.1} parent=27 // pred_fallthru
          _
      $region28: #{tpu_custom_call.1} parent=5 // pred_fallthru
        _
      %p511 = scmp.le.s32.totalorder 2, %s16
      // Predicated region
      $region41: #{tpu_custom_call.1} parent=5 // pred_check
        %p512 = pneg %p511
      $region42: #{tpu_custom_call.1} parent=5 // pred_check_branch
        %514 = sbr.rel (%p512) target = $region44
      $region43: #{tpu_custom_call.1} parent=5 // pred_region
        %s515 = ssub.s32 %s16, 2
        // Predicated region
        $region45: #{tpu_custom_call.1} parent=43 // pred_check
          %p516 = pneg %p108
        $region46: #{tpu_custom_call.1} parent=43 // pred_check_branch
          %518 = sbr.rel (%p516) target = $region48
        $region47: #{tpu_custom_call.1} parent=43 // pred_region
          %s519 = sand.u32 %s93, 1
          %s520 = scalar_lea.sflag [#allocation3], %s519
          %s521 = sand.u32 %s93, 1
          %s522 = smul.addr %s521, 32
          %s523 = scalar_lea.vmem [#allocation2], %s522
          %524 = dma.done %s520, 512
        $region48: #{tpu_custom_call.1} parent=43 // pred_fallthru
          _
        // Predicated region
        $region49: #{tpu_custom_call.1} parent=43 // pred_check
          %p525 = pneg %p134
        $region50: #{tpu_custom_call.1} parent=43 // pred_check_branch
          %527 = sbr.rel (%p525) target = $region52
        $region51: #{tpu_custom_call.1} parent=43 // pred_region
          %s528 = sand.u32 %s119, 1
          %s529 = scalar_lea.sflag [#allocation5], %s528
          %s530 = sand.u32 %s119, 1
          %s531 = smul.addr %s530, 2
          %s532 = scalar_lea.vmem [#allocation4], %s531
          %533 = dma.done %s529, 32
        $region52: #{tpu_custom_call.1} parent=43 // pred_fallthru
          _
      $region44: #{tpu_custom_call.1} parent=5 // pred_fallthru
        _
    $region6: #{tpu_custom_call.1} parent=1 // loop_footer
      %s20 = sadd.s32 1, %s16
    $region7: #{tpu_custom_call.1} parent=1 // loop_footer_branch
      %15 = sbr.rel target = $region3
    $region8: #{tpu_custom_call.1} parent=1 // loop_exit
      _
    %534 = vsyncpa [#allocation3], 1
    %s535 = scalar_lea.sflag [#allocation3], 1
    %536 = vsyncpa %s535, 1
    %537 = vsyncpa [#allocation5], 1
    %s538 = scalar_lea.sflag [#allocation5], 1
    %539 = vsyncpa %s538, 1

</llo_original>
